<compile_context>
chip_gen: v5e
topology: v5e:2x2
jax: 0.10.0
libtpu: 0.0.40
codegen_flags: <defaults>
</compile_context>

<pallas_src>
import functools
import math

import jax
import jax.numpy as jnp
from jax.experimental import pallas as pl
from jax.experimental.pallas import tpu as pltpu  # noqa: F401  (TPU-specific tuning hooks)


# ---------------------------------------------------------------------------
# Pallas kernel: whole batch in one invocation (no grid).
# ---------------------------------------------------------------------------
def _self_attention_kernel(
    x_ref,        # (B*L, F)   batch-major flattened input
    w_qkv_ref,    # (F, 3E)    fused fc_{q,k,v} @ in_proj weight (Q block pre-scaled)
    b_qkv_ref,    # (1, 3E)    fused in_proj bias (Q block pre-scaled)
    wo_t_ref,     # (E, E)     out_proj weight, transposed
    bo_ref,       # (1, E)     out_proj bias
    out_ref,      # (B*L, E)   relu(attn_output), batch-major flat (contiguous store)
    attnw_ref,    # (B*L, L)   head-averaged attention weights, batch-major flat
    *, num_heads, embed_dim, seq_len, batch):
    E = embed_dim
    H = num_heads
    L = seq_len
    B = batch
    hd = E // H
    inv_h = 1.0 / H

    x2d = x_ref[...].astype(jnp.float32)        # (B*L, F)
    w_qkv = w_qkv_ref[...]
    b_qkv = b_qkv_ref[...]
    wo_t = wo_t_ref[...]
    bo = bo_ref[...]

    # Single fused projection for the whole batch: one MXU matmul + one bias add.
    qkv = jnp.dot(x2d, w_qkv, preferred_element_type=jnp.float32) + b_qkv  # (B*L, 3E)

    o_rows = []   # per-batch (L, E) attention context (all heads, lane-concatenated)
    w_rows = []   # per-batch (L, L) head-averaged attention weights
    for b in range(B):                           # static unroll; B is tiny (2)
        r0 = b * L                               # sublane-aligned (multiple of 8) row slice
        q_b = qkv[r0:r0 + L, 0:E]
        k_b = qkv[r0:r0 + L, E:2 * E]
        v_b = qkv[r0:r0 + L, 2 * E:3 * E]

        o_heads = []
        w_sum = jnp.zeros((L, L), jnp.float32)
        for h in range(H):                       # static unroll over heads (scores are per-head)
            lo = h * hd
            hi = lo + hd
            # q already scaled by 1/sqrt(hd) via the fused weight.
            s = jnp.dot(q_b[:, lo:hi], k_b[:, lo:hi].T,
                        preferred_element_type=jnp.float32)               # (L, L)
            s = s - jnp.max(s, axis=-1, keepdims=True)
            p = jnp.exp(s)
            # Exact reciprocal (EUP/VPU) * multiply instead of a vector divide.
            p = p * pl.reciprocal(jnp.sum(p, axis=-1, keepdims=True), approx=False)
            w_sum = w_sum + p
            o_heads.append(jnp.dot(p, v_b[:, lo:hi],
                                   preferred_element_type=jnp.float32))   # (L, hd)

        o_rows.append(jnp.concatenate(o_heads, axis=1))                   # (L, E)
        w_rows.append(w_sum * inv_h)                                      # mean over heads

    # Single output projection for the whole batch: one MXU matmul + one bias add.
    o_all = jnp.concatenate(o_rows, axis=0)                               # (B*L, E)
    out = jnp.dot(o_all, wo_t, preferred_element_type=jnp.float32) + bo
    out_ref[...] = jnp.maximum(out, 0.0)                                  # F.relu, full-slab store
    attnw_ref[...] = jnp.concatenate(w_rows, axis=0)                      # (B*L, L), full-slab store


# ---------------------------------------------------------------------------
# One-time parameter preprocessing (hoisted out of the forward call path).
# ---------------------------------------------------------------------------
def prepare_fused_params(params, num_heads):
    E = params["out_proj_weight"].shape[0]
    hd = E // num_heads
    scale = 1.0 / math.sqrt(hd)

    in_w = params["in_proj_weight"]              # (3E, E)
    in_b = params["in_proj_bias"]                # (3E,)

    # (x @ Wq.T) @ Wqi.T + bqi == x @ (Wq.T @ Wqi.T) + bqi ; fold 1/sqrt(hd) into Q.
    wq_f = (params["wq"].T @ in_w[0:E, :].T) * scale        # (F, E)
    wk_f = params["wk"].T @ in_w[E:2 * E, :].T              # (F, E)
    wv_f = params["wv"].T @ in_w[2 * E:3 * E, :].T          # (F, E)
    w_qkv = jnp.concatenate([wq_f, wk_f, wv_f], axis=1)     # (F, 3E)
    b_qkv = jnp.concatenate(
        [in_b[0:E] * scale, in_b[E:2 * E], in_b[2 * E:3 * E]]).reshape(1, 3 * E)

    return {
        "w_qkv": w_qkv,
        "b_qkv": b_qkv,
        "wo_t": params["out_proj_weight"].T,                # (E, E)
        "bo": params["out_proj_bias"].reshape(1, E),        # (1, E)
    }


# ---------------------------------------------------------------------------
# Jitted forward: one pallas_call plus free layout plumbing.
# ---------------------------------------------------------------------------
@functools.partial(jax.jit, static_argnums=(2,))
def self_attention_forward(x_lbf, fused, num_heads):
    L, B, F = x_lbf.shape
    E = fused["wo_t"].shape[0]

    # Batch-major flat layout for lane/row-dense kernel I/O.
    x2d = jnp.transpose(x_lbf, (1, 0, 2)).reshape(B * L, F)

    kernel = functools.partial(_self_attention_kernel,
                               num_heads=num_heads, embed_dim=E,
                               seq_len=L, batch=B)

    # No grid: every operand is a single whole-array VMEM block (default BlockSpecs),
    # so there is zero grid-step / pipelining overhead.
    out2d, attnw2d = pl.pallas_call(
        kernel,
        out_shape=(jax.ShapeDtypeStruct((B * L, E), jnp.float32),
                   jax.ShapeDtypeStruct((B * L, L), jnp.float32)),
    )(x2d, fused["w_qkv"], fused["b_qkv"], fused["wo_t"], fused["bo"])

    attn_output = jnp.transpose(out2d.reshape(B, L, E), (1, 0, 2))   # (L, B, E) seq-first
    attn_weights = attnw2d.reshape(B, L, L)                          # (B, L, L)
    return attn_output, attn_weights


# ---------------------------------------------------------------------------
# Pure-JAX reference (mirrors PyTorch nn.MultiheadAttention semantics)
# ---------------------------------------------------------------------------
def self_attention_reference(x_lbf, params, num_heads):
    L, B, F = x_lbf.shape
    E = params["wq"].shape[0]
    hd = E // num_heads
    q = x_lbf @ params["wq"].T
    k = x_lbf @ params["wk"].T
    v = x_lbf @ params["wv"].T
    in_w, in_b = params["in_proj_weight"], params["in_proj_bias"]
    q = q @ in_w[0:E].T + in_b[0:E]
    k = k @ in_w[E:2 * E].T + in_b[E:2 * E]
    v = v @ in_w[2 * E:3 * E].T + in_b[2 * E:3 * E]

    def split(t):  # (L, B, E) -> (B, H, L, hd)
        return jnp.transpose(t.reshape(L, B, num_heads, hd), (1, 2, 0, 3))

    qh, kh, vh = split(q), split(k), split(v)
    s = jnp.einsum("bhld,bhmd->bhlm", qh * (1.0 / math.sqrt(hd)), kh)
    p = jax.nn.softmax(s, axis=-1)
    o = jnp.einsum("bhlm,bhmd->bhld", p, vh)
    o = jnp.transpose(o, (2, 0, 1, 3)).reshape(L, B, E)
    out = o @ params["out_proj_weight"].T + params["out_proj_bias"]
    out = jnp.maximum(out, 0.0)
    return out, jnp.mean(p, axis=1)


# ---------------------------------------------------------------------------
# Main
# ---------------------------------------------------------------------------
if __name__ == "__main__":
    batch_size = 2
    num_frames = 8          # sequence length L
    num_features = 32       # input feature dim F
    embed_dim = 32          # E
    num_heads = 4           # head_dim = 8

    key = jax.random.PRNGKey(0)
    kx, k1, k2, k3, k4, k5, k6, k7 = jax.random.split(key, 8)

    params = {
        "wq": 0.1 * jax.random.normal(k1, (embed_dim, num_features), jnp.float32),
        "wk": 0.1 * jax.random.normal(k2, (embed_dim, num_features), jnp.float32),
        "wv": 0.1 * jax.random.normal(k3, (embed_dim, num_features), jnp.float32),
        "in_proj_weight": 0.1 * jax.random.normal(k4, (3 * embed_dim, embed_dim), jnp.float32),
        "in_proj_bias": 0.1 * jax.random.normal(k5, (3 * embed_dim,), jnp.float32),
        "out_proj_weight": 0.1 * jax.random.normal(k6, (embed_dim, embed_dim), jnp.float32),
        "out_proj_bias": 0.1 * jax.random.normal(k7, (embed_dim,), jnp.float32),
    }

    # input: (L, B, F), PyTorch MHA default seq-first layout
    x = jax.random.normal(kx, (num_frames, batch_size, num_features), jnp.float32)

    # One-time weight fusion (outside the per-call path).
    fused = jax.tree.map(jax.block_until_ready, prepare_fused_params(params, num_heads))

    attn_out, attn_w = self_attention_forward(x, fused, num_heads)
    attn_out = jax.block_until_ready(attn_out)
    attn_w = jax.block_until_ready(attn_w)

    ref_out, ref_w = self_attention_reference(x, params, num_heads)

    assert attn_out.shape == (num_frames, batch_size, embed_dim)
    assert attn_w.shape == (batch_size, num_frames, num_frames)
    assert jnp.allclose(attn_out, ref_out, atol=1e-4, rtol=1e-4)
    assert jnp.allclose(attn_w, ref_w, atol=1e-4, rtol=1e-4)

    print("KERNEL_OK")
</pallas_src>

<mosaic_0001>
module attributes {stable_mosaic.version = 11 : i64} {
  func.func @_self_attention_kernel(%arg0: memref<16x32xf32, #tpu.memory_space<vmem>>, %arg1: memref<32x96xf32, #tpu.memory_space<vmem>>, %arg2: memref<1x96xf32, #tpu.memory_space<vmem>>, %arg3: memref<32x32xf32, #tpu.memory_space<vmem>>, %arg4: memref<1x32xf32, #tpu.memory_space<vmem>>, %arg5: memref<16x32xf32, #tpu.memory_space<vmem>>, %arg6: memref<16x8xf32, #tpu.memory_space<vmem>>) attributes {dimension_semantics = [], scalar_prefetch = 0 : i64, scratch_operands = 0 : i64, tpu.core_type = #tpu.core_type<tc>} {
    %c0 = arith.constant 0 : index
    %c0_0 = arith.constant 0 : index
    %0 = vector.load %arg0[%c0, %c0_0] : memref<16x32xf32, #tpu.memory_space<vmem>>, vector<16x32xf32>
    %c0_1 = arith.constant 0 : index
    %c0_2 = arith.constant 0 : index
    %1 = vector.load %arg1[%c0_1, %c0_2] : memref<32x96xf32, #tpu.memory_space<vmem>>, vector<32x96xf32>
    %c0_3 = arith.constant 0 : index
    %c0_4 = arith.constant 0 : index
    %2 = vector.load %arg2[%c0_3, %c0_4] : memref<1x96xf32, #tpu.memory_space<vmem>>, vector<1x96xf32>
    %c0_5 = arith.constant 0 : index
    %c0_6 = arith.constant 0 : index
    %3 = vector.load %arg3[%c0_5, %c0_6] : memref<32x32xf32, #tpu.memory_space<vmem>>, vector<32x32xf32>
    %c0_7 = arith.constant 0 : index
    %c0_8 = arith.constant 0 : index
    %4 = vector.load %arg4[%c0_7, %c0_8] : memref<1x32xf32, #tpu.memory_space<vmem>>, vector<1x32xf32>
    %cst = arith.constant dense<0.000000e+00> : vector<16x96xf32>
    %5 = tpu.matmul %0, %1, %cst {dimension_numbers = #tpu.dot_dimension_numbers<[1], [0], [0], [1], [0, 0, 1, 1], [], []>} : vector<16x32xf32>, vector<32x96xf32>, vector<16x96xf32> -> vector<16x96xf32>
    %6 = vector.broadcast %2 : vector<1x96xf32> to vector<16x96xf32>
    %7 = arith.addf %5, %6 : vector<16x96xf32>
    %8 = vector.extract_strided_slice %7 {offsets = [0, 0], sizes = [8, 32], strides = [1, 1]} : vector<16x96xf32> to vector<8x32xf32>
    %9 = vector.extract_strided_slice %7 {offsets = [0, 32], sizes = [8, 32], strides = [1, 1]} : vector<16x96xf32> to vector<8x32xf32>
    %10 = vector.extract_strided_slice %7 {offsets = [0, 64], sizes = [8, 32], strides = [1, 1]} : vector<16x96xf32> to vector<8x32xf32>
    %cst_9 = arith.constant 0.000000e+00 : f32
    %11 = vector.broadcast %cst_9 : f32 to vector<8x8xf32>
    %12 = vector.extract_strided_slice %8 {offsets = [0, 0], sizes = [8, 8], strides = [1, 1]} : vector<8x32xf32> to vector<8x8xf32>
    %13 = vector.extract_strided_slice %9 {offsets = [0, 0], sizes = [8, 8], strides = [1, 1]} : vector<8x32xf32> to vector<8x8xf32>
    %14 = tpu.transpose %13, [1, 0] : vector<8x8xf32> -> vector<8x8xf32>
    %cst_10 = arith.constant dense<0.000000e+00> : vector<8x8xf32>
    %15 = tpu.matmul %12, %14, %cst_10 {dimension_numbers = #tpu.dot_dimension_numbers<[1], [0], [0], [1], [0, 0, 1, 1], [], []>} : vector<8x8xf32>, vector<8x8xf32>, vector<8x8xf32> -> vector<8x8xf32>
    %cst_11 = arith.constant dense<0xFF800000> : vector<8xf32>
    %16 = vector.multi_reduction <maximumf>, %15, %cst_11 [1] : vector<8x8xf32> to vector<8xf32>
    %17 = vector.shape_cast %16 : vector<8xf32> to vector<8x1xf32>
    %18 = vector.broadcast %17 : vector<8x1xf32> to vector<8x8xf32>
    %19 = arith.subf %15, %18 : vector<8x8xf32>
    %20 = math.exp %19 : vector<8x8xf32>
    %cst_12 = arith.constant dense<0.000000e+00> : vector<8xf32>
    %21 = vector.multi_reduction <add>, %20, %cst_12 [1] : vector<8x8xf32> to vector<8xf32>
    %22 = vector.shape_cast %21 : vector<8xf32> to vector<8x1xf32>
    %23 = tpu.reciprocal %22 : vector<8x1xf32> -> vector<8x1xf32>
    %24 = vector.broadcast %23 : vector<8x1xf32> to vector<8x8xf32>
    %25 = arith.mulf %20, %24 : vector<8x8xf32>
    %26 = arith.addf %11, %25 : vector<8x8xf32>
    %27 = vector.extract_strided_slice %10 {offsets = [0, 0], sizes = [8, 8], strides = [1, 1]} : vector<8x32xf32> to vector<8x8xf32>
    %cst_13 = arith.constant dense<0.000000e+00> : vector<8x8xf32>
    %28 = tpu.matmul %25, %27, %cst_13 {dimension_numbers = #tpu.dot_dimension_numbers<[1], [0], [0], [1], [0, 0, 1, 1], [], []>} : vector<8x8xf32>, vector<8x8xf32>, vector<8x8xf32> -> vector<8x8xf32>
    %29 = vector.extract_strided_slice %8 {offsets = [0, 8], sizes = [8, 8], strides = [1, 1]} : vector<8x32xf32> to vector<8x8xf32>
    %30 = vector.extract_strided_slice %9 {offsets = [0, 8], sizes = [8, 8], strides = [1, 1]} : vector<8x32xf32> to vector<8x8xf32>
    %31 = tpu.transpose %30, [1, 0] : vector<8x8xf32> -> vector<8x8xf32>
    %cst_14 = arith.constant dense<0.000000e+00> : vector<8x8xf32>
    %32 = tpu.matmul %29, %31, %cst_14 {dimension_numbers = #tpu.dot_dimension_numbers<[1], [0], [0], [1], [0, 0, 1, 1], [], []>} : vector<8x8xf32>, vector<8x8xf32>, vector<8x8xf32> -> vector<8x8xf32>
    %cst_15 = arith.constant dense<0xFF800000> : vector<8xf32>
    %33 = vector.multi_reduction <maximumf>, %32, %cst_15 [1] : vector<8x8xf32> to vector<8xf32>
    %34 = vector.shape_cast %33 : vector<8xf32> to vector<8x1xf32>
    %35 = vector.broadcast %34 : vector<8x1xf32> to vector<8x8xf32>
    %36 = arith.subf %32, %35 : vector<8x8xf32>
    %37 = math.exp %36 : vector<8x8xf32>
    %cst_16 = arith.constant dense<0.000000e+00> : vector<8xf32>
    %38 = vector.multi_reduction <add>, %37, %cst_16 [1] : vector<8x8xf32> to vector<8xf32>
    %39 = vector.shape_cast %38 : vector<8xf32> to vector<8x1xf32>
    %40 = tpu.reciprocal %39 : vector<8x1xf32> -> vector<8x1xf32>
    %41 = vector.broadcast %40 : vector<8x1xf32> to vector<8x8xf32>
    %42 = arith.mulf %37, %41 : vector<8x8xf32>
    %43 = arith.addf %26, %42 : vector<8x8xf32>
    %44 = vector.extract_strided_slice %10 {offsets = [0, 8], sizes = [8, 8], strides = [1, 1]} : vector<8x32xf32> to vector<8x8xf32>
    %cst_17 = arith.constant dense<0.000000e+00> : vector<8x8xf32>
    %45 = tpu.matmul %42, %44, %cst_17 {dimension_numbers = #tpu.dot_dimension_numbers<[1], [0], [0], [1], [0, 0, 1, 1], [], []>} : vector<8x8xf32>, vector<8x8xf32>, vector<8x8xf32> -> vector<8x8xf32>
    %46 = vector.extract_strided_slice %8 {offsets = [0, 16], sizes = [8, 8], strides = [1, 1]} : vector<8x32xf32> to vector<8x8xf32>
    %47 = vector.extract_strided_slice %9 {offsets = [0, 16], sizes = [8, 8], strides = [1, 1]} : vector<8x32xf32> to vector<8x8xf32>
    %48 = tpu.transpose %47, [1, 0] : vector<8x8xf32> -> vector<8x8xf32>
    %cst_18 = arith.constant dense<0.000000e+00> : vector<8x8xf32>
    %49 = tpu.matmul %46, %48, %cst_18 {dimension_numbers = #tpu.dot_dimension_numbers<[1], [0], [0], [1], [0, 0, 1, 1], [], []>} : vector<8x8xf32>, vector<8x8xf32>, vector<8x8xf32> -> vector<8x8xf32>
    %cst_19 = arith.constant dense<0xFF800000> : vector<8xf32>
    %50 = vector.multi_reduction <maximumf>, %49, %cst_19 [1] : vector<8x8xf32> to vector<8xf32>
    %51 = vector.shape_cast %50 : vector<8xf32> to vector<8x1xf32>
    %52 = vector.broadcast %51 : vector<8x1xf32> to vector<8x8xf32>
    %53 = arith.subf %49, %52 : vector<8x8xf32>
    %54 = math.exp %53 : vector<8x8xf32>
    %cst_20 = arith.constant dense<0.000000e+00> : vector<8xf32>
    %55 = vector.multi_reduction <add>, %54, %cst_20 [1] : vector<8x8xf32> to vector<8xf32>
    %56 = vector.shape_cast %55 : vector<8xf32> to vector<8x1xf32>
    %57 = tpu.reciprocal %56 : vector<8x1xf32> -> vector<8x1xf32>
    %58 = vector.broadcast %57 : vector<8x1xf32> to vector<8x8xf32>
    %59 = arith.mulf %54, %58 : vector<8x8xf32>
    %60 = arith.addf %43, %59 : vector<8x8xf32>
    %61 = vector.extract_strided_slice %10 {offsets = [0, 16], sizes = [8, 8], strides = [1, 1]} : vector<8x32xf32> to vector<8x8xf32>
    %cst_21 = arith.constant dense<0.000000e+00> : vector<8x8xf32>
    %62 = tpu.matmul %59, %61, %cst_21 {dimension_numbers = #tpu.dot_dimension_numbers<[1], [0], [0], [1], [0, 0, 1, 1], [], []>} : vector<8x8xf32>, vector<8x8xf32>, vector<8x8xf32> -> vector<8x8xf32>
    %63 = vector.extract_strided_slice %8 {offsets = [0, 24], sizes = [8, 8], strides = [1, 1]} : vector<8x32xf32> to vector<8x8xf32>
    %64 = vector.extract_strided_slice %9 {offsets = [0, 24], sizes = [8, 8], strides = [1, 1]} : vector<8x32xf32> to vector<8x8xf32>
    %65 = tpu.transpose %64, [1, 0] : vector<8x8xf32> -> vector<8x8xf32>
    %cst_22 = arith.constant dense<0.000000e+00> : vector<8x8xf32>
    %66 = tpu.matmul %63, %65, %cst_22 {dimension_numbers = #tpu.dot_dimension_numbers<[1], [0], [0], [1], [0, 0, 1, 1], [], []>} : vector<8x8xf32>, vector<8x8xf32>, vector<8x8xf32> -> vector<8x8xf32>
    %cst_23 = arith.constant dense<0xFF800000> : vector<8xf32>
    %67 = vector.multi_reduction <maximumf>, %66, %cst_23 [1] : vector<8x8xf32> to vector<8xf32>
    %68 = vector.shape_cast %67 : vector<8xf32> to vector<8x1xf32>
    %69 = vector.broadcast %68 : vector<8x1xf32> to vector<8x8xf32>
    %70 = arith.subf %66, %69 : vector<8x8xf32>
    %71 = math.exp %70 : vector<8x8xf32>
    %cst_24 = arith.constant dense<0.000000e+00> : vector<8xf32>
    %72 = vector.multi_reduction <add>, %71, %cst_24 [1] : vector<8x8xf32> to vector<8xf32>
    %73 = vector.shape_cast %72 : vector<8xf32> to vector<8x1xf32>
    %74 = tpu.reciprocal %73 : vector<8x1xf32> -> vector<8x1xf32>
    %75 = vector.broadcast %74 : vector<8x1xf32> to vector<8x8xf32>
    %76 = arith.mulf %71, %75 : vector<8x8xf32>
    %77 = arith.addf %60, %76 : vector<8x8xf32>
    %78 = vector.extract_strided_slice %10 {offsets = [0, 24], sizes = [8, 8], strides = [1, 1]} : vector<8x32xf32> to vector<8x8xf32>
    %cst_25 = arith.constant dense<0.000000e+00> : vector<8x8xf32>
    %79 = tpu.matmul %76, %78, %cst_25 {dimension_numbers = #tpu.dot_dimension_numbers<[1], [0], [0], [1], [0, 0, 1, 1], [], []>} : vector<8x8xf32>, vector<8x8xf32>, vector<8x8xf32> -> vector<8x8xf32>
    %80 = tpu.concatenate %28, %45, %62, %79 in 1 : vector<8x8xf32>, vector<8x8xf32>, vector<8x8xf32>, vector<8x8xf32> -> vector<8x32xf32>
    %cst_26 = arith.constant 2.500000e-01 : f32
    %81 = vector.broadcast %cst_26 : f32 to vector<8x8xf32>
    %82 = arith.mulf %77, %81 : vector<8x8xf32>
    %83 = vector.extract_strided_slice %7 {offsets = [8, 0], sizes = [8, 32], strides = [1, 1]} : vector<16x96xf32> to vector<8x32xf32>
    %84 = vector.extract_strided_slice %7 {offsets = [8, 32], sizes = [8, 32], strides = [1, 1]} : vector<16x96xf32> to vector<8x32xf32>
    %85 = vector.extract_strided_slice %7 {offsets = [8, 64], sizes = [8, 32], strides = [1, 1]} : vector<16x96xf32> to vector<8x32xf32>
    %cst_27 = arith.constant 0.000000e+00 : f32
    %86 = vector.broadcast %cst_27 : f32 to vector<8x8xf32>
    %87 = vector.extract_strided_slice %83 {offsets = [0, 0], sizes = [8, 8], strides = [1, 1]} : vector<8x32xf32> to vector<8x8xf32>
    %88 = vector.extract_strided_slice %84 {offsets = [0, 0], sizes = [8, 8], strides = [1, 1]} : vector<8x32xf32> to vector<8x8xf32>
    %89 = tpu.transpose %88, [1, 0] : vector<8x8xf32> -> vector<8x8xf32>
    %cst_28 = arith.constant dense<0.000000e+00> : vector<8x8xf32>
    %90 = tpu.matmul %87, %89, %cst_28 {dimension_numbers = #tpu.dot_dimension_numbers<[1], [0], [0], [1], [0, 0, 1, 1], [], []>} : vector<8x8xf32>, vector<8x8xf32>, vector<8x8xf32> -> vector<8x8xf32>
    %cst_29 = arith.constant dense<0xFF800000> : vector<8xf32>
    %91 = vector.multi_reduction <maximumf>, %90, %cst_29 [1] : vector<8x8xf32> to vector<8xf32>
    %92 = vector.shape_cast %91 : vector<8xf32> to vector<8x1xf32>
    %93 = vector.broadcast %92 : vector<8x1xf32> to vector<8x8xf32>
    %94 = arith.subf %90, %93 : vector<8x8xf32>
    %95 = math.exp %94 : vector<8x8xf32>
    %cst_30 = arith.constant dense<0.000000e+00> : vector<8xf32>
    %96 = vector.multi_reduction <add>, %95, %cst_30 [1] : vector<8x8xf32> to vector<8xf32>
    %97 = vector.shape_cast %96 : vector<8xf32> to vector<8x1xf32>
    %98 = tpu.reciprocal %97 : vector<8x1xf32> -> vector<8x1xf32>
    %99 = vector.broadcast %98 : vector<8x1xf32> to vector<8x8xf32>
    %100 = arith.mulf %95, %99 : vector<8x8xf32>
    %101 = arith.addf %86, %100 : vector<8x8xf32>
    %102 = vector.extract_strided_slice %85 {offsets = [0, 0], sizes = [8, 8], strides = [1, 1]} : vector<8x32xf32> to vector<8x8xf32>
    %cst_31 = arith.constant dense<0.000000e+00> : vector<8x8xf32>
    %103 = tpu.matmul %100, %102, %cst_31 {dimension_numbers = #tpu.dot_dimension_numbers<[1], [0], [0], [1], [0, 0, 1, 1], [], []>} : vector<8x8xf32>, vector<8x8xf32>, vector<8x8xf32> -> vector<8x8xf32>
    %104 = vector.extract_strided_slice %83 {offsets = [0, 8], sizes = [8, 8], strides = [1, 1]} : vector<8x32xf32> to vector<8x8xf32>
    %105 = vector.extract_strided_slice %84 {offsets = [0, 8], sizes = [8, 8], strides = [1, 1]} : vector<8x32xf32> to vector<8x8xf32>
    %106 = tpu.transpose %105, [1, 0] : vector<8x8xf32> -> vector<8x8xf32>
    %cst_32 = arith.constant dense<0.000000e+00> : vector<8x8xf32>
    %107 = tpu.matmul %104, %106, %cst_32 {dimension_numbers = #tpu.dot_dimension_numbers<[1], [0], [0], [1], [0, 0, 1, 1], [], []>} : vector<8x8xf32>, vector<8x8xf32>, vector<8x8xf32> -> vector<8x8xf32>
    %cst_33 = arith.constant dense<0xFF800000> : vector<8xf32>
    %108 = vector.multi_reduction <maximumf>, %107, %cst_33 [1] : vector<8x8xf32> to vector<8xf32>
    %109 = vector.shape_cast %108 : vector<8xf32> to vector<8x1xf32>
    %110 = vector.broadcast %109 : vector<8x1xf32> to vector<8x8xf32>
    %111 = arith.subf %107, %110 : vector<8x8xf32>
    %112 = math.exp %111 : vector<8x8xf32>
    %cst_34 = arith.constant dense<0.000000e+00> : vector<8xf32>
    %113 = vector.multi_reduction <add>, %112, %cst_34 [1] : vector<8x8xf32> to vector<8xf32>
    %114 = vector.shape_cast %113 : vector<8xf32> to vector<8x1xf32>
    %115 = tpu.reciprocal %114 : vector<8x1xf32> -> vector<8x1xf32>
    %116 = vector.broadcast %115 : vector<8x1xf32> to vector<8x8xf32>
    %117 = arith.mulf %112, %116 : vector<8x8xf32>
    %118 = arith.addf %101, %117 : vector<8x8xf32>
    %119 = vector.extract_strided_slice %85 {offsets = [0, 8], sizes = [8, 8], strides = [1, 1]} : vector<8x32xf32> to vector<8x8xf32>
    %cst_35 = arith.constant dense<0.000000e+00> : vector<8x8xf32>
    %120 = tpu.matmul %117, %119, %cst_35 {dimension_numbers = #tpu.dot_dimension_numbers<[1], [0], [0], [1], [0, 0, 1, 1], [], []>} : vector<8x8xf32>, vector<8x8xf32>, vector<8x8xf32> -> vector<8x8xf32>
    %121 = vector.extract_strided_slice %83 {offsets = [0, 16], sizes = [8, 8], strides = [1, 1]} : vector<8x32xf32> to vector<8x8xf32>
    %122 = vector.extract_strided_slice %84 {offsets = [0, 16], sizes = [8, 8], strides = [1, 1]} : vector<8x32xf32> to vector<8x8xf32>
    %123 = tpu.transpose %122, [1, 0] : vector<8x8xf32> -> vector<8x8xf32>
    %cst_36 = arith.constant dense<0.000000e+00> : vector<8x8xf32>
    %124 = tpu.matmul %121, %123, %cst_36 {dimension_numbers = #tpu.dot_dimension_numbers<[1], [0], [0], [1], [0, 0, 1, 1], [], []>} : vector<8x8xf32>, vector<8x8xf32>, vector<8x8xf32> -> vector<8x8xf32>
    %cst_37 = arith.constant dense<0xFF800000> : vector<8xf32>
    %125 = vector.multi_reduction <maximumf>, %124, %cst_37 [1] : vector<8x8xf32> to vector<8xf32>
    %126 = vector.shape_cast %125 : vector<8xf32> to vector<8x1xf32>
    %127 = vector.broadcast %126 : vector<8x1xf32> to vector<8x8xf32>
    %128 = arith.subf %124, %127 : vector<8x8xf32>
    %129 = math.exp %128 : vector<8x8xf32>
    %cst_38 = arith.constant dense<0.000000e+00> : vector<8xf32>
    %130 = vector.multi_reduction <add>, %129, %cst_38 [1] : vector<8x8xf32> to vector<8xf32>
    %131 = vector.shape_cast %130 : vector<8xf32> to vector<8x1xf32>
    %132 = tpu.reciprocal %131 : vector<8x1xf32> -> vector<8x1xf32>
    %133 = vector.broadcast %132 : vector<8x1xf32> to vector<8x8xf32>
    %134 = arith.mulf %129, %133 : vector<8x8xf32>
    %135 = arith.addf %118, %134 : vector<8x8xf32>
    %136 = vector.extract_strided_slice %85 {offsets = [0, 16], sizes = [8, 8], strides = [1, 1]} : vector<8x32xf32> to vector<8x8xf32>
    %cst_39 = arith.constant dense<0.000000e+00> : vector<8x8xf32>
    %137 = tpu.matmul %134, %136, %cst_39 {dimension_numbers = #tpu.dot_dimension_numbers<[1], [0], [0], [1], [0, 0, 1, 1], [], []>} : vector<8x8xf32>, vector<8x8xf32>, vector<8x8xf32> -> vector<8x8xf32>
    %138 = vector.extract_strided_slice %83 {offsets = [0, 24], sizes = [8, 8], strides = [1, 1]} : vector<8x32xf32> to vector<8x8xf32>
    %139 = vector.extract_strided_slice %84 {offsets = [0, 24], sizes = [8, 8], strides = [1, 1]} : vector<8x32xf32> to vector<8x8xf32>
    %140 = tpu.transpose %139, [1, 0] : vector<8x8xf32> -> vector<8x8xf32>
    %cst_40 = arith.constant dense<0.000000e+00> : vector<8x8xf32>
    %141 = tpu.matmul %138, %140, %cst_40 {dimension_numbers = #tpu.dot_dimension_numbers<[1], [0], [0], [1], [0, 0, 1, 1], [], []>} : vector<8x8xf32>, vector<8x8xf32>, vector<8x8xf32> -> vector<8x8xf32>
    %cst_41 = arith.constant dense<0xFF800000> : vector<8xf32>
    %142 = vector.multi_reduction <maximumf>, %141, %cst_41 [1] : vector<8x8xf32> to vector<8xf32>
    %143 = vector.shape_cast %142 : vector<8xf32> to vector<8x1xf32>
    %144 = vector.broadcast %143 : vector<8x1xf32> to vector<8x8xf32>
    %145 = arith.subf %141, %144 : vector<8x8xf32>
    %146 = math.exp %145 : vector<8x8xf32>
    %cst_42 = arith.constant dense<0.000000e+00> : vector<8xf32>
    %147 = vector.multi_reduction <add>, %146, %cst_42 [1] : vector<8x8xf32> to vector<8xf32>
    %148 = vector.shape_cast %147 : vector<8xf32> to vector<8x1xf32>
    %149 = tpu.reciprocal %148 : vector<8x1xf32> -> vector<8x1xf32>
    %150 = vector.broadcast %149 : vector<8x1xf32> to vector<8x8xf32>
    %151 = arith.mulf %146, %150 : vector<8x8xf32>
    %152 = arith.addf %135, %151 : vector<8x8xf32>
    %153 = vector.extract_strided_slice %85 {offsets = [0, 24], sizes = [8, 8], strides = [1, 1]} : vector<8x32xf32> to vector<8x8xf32>
    %cst_43 = arith.constant dense<0.000000e+00> : vector<8x8xf32>
    %154 = tpu.matmul %151, %153, %cst_43 {dimension_numbers = #tpu.dot_dimension_numbers<[1], [0], [0], [1], [0, 0, 1, 1], [], []>} : vector<8x8xf32>, vector<8x8xf32>, vector<8x8xf32> -> vector<8x8xf32>
    %155 = tpu.concatenate %103, %120, %137, %154 in 1 : vector<8x8xf32>, vector<8x8xf32>, vector<8x8xf32>, vector<8x8xf32> -> vector<8x32xf32>
    %cst_44 = arith.constant 2.500000e-01 : f32
    %156 = vector.broadcast %cst_44 : f32 to vector<8x8xf32>
    %157 = arith.mulf %152, %156 : vector<8x8xf32>
    %158 = tpu.concatenate %80, %155 in 0 : vector<8x32xf32>, vector<8x32xf32> -> vector<16x32xf32>
    %cst_45 = arith.constant dense<0.000000e+00> : vector<16x32xf32>
    %159 = tpu.matmul %158, %3, %cst_45 {dimension_numbers = #tpu.dot_dimension_numbers<[1], [0], [0], [1], [0, 0, 1, 1], [], []>} : vector<16x32xf32>, vector<32x32xf32>, vector<16x32xf32> -> vector<16x32xf32>
    %160 = vector.broadcast %4 : vector<1x32xf32> to vector<16x32xf32>
    %161 = arith.addf %159, %160 : vector<16x32xf32>
    %cst_46 = arith.constant 0.000000e+00 : f32
    %162 = vector.broadcast %cst_46 : f32 to vector<16x32xf32>
    %163 = arith.maximumf %161, %162 : vector<16x32xf32>
    %c0_47 = arith.constant 0 : index
    %c0_48 = arith.constant 0 : index
    %164 = vector.load %arg5[%c0_47, %c0_48] : memref<16x32xf32, #tpu.memory_space<vmem>>, vector<16x32xf32>
    tpu.vector_store %arg5[%c0_47, %c0_48], %163 {strides = array<i32>} : memref<16x32xf32, #tpu.memory_space<vmem>>, vector<16x32xf32>,
    %165 = tpu.concatenate %82, %157 in 0 : vector<8x8xf32>, vector<8x8xf32> -> vector<16x8xf32>
    %c0_49 = arith.constant 0 : index
    %c0_50 = arith.constant 0 : index
    %166 = vector.load %arg6[%c0_49, %c0_50] : memref<16x8xf32, #tpu.memory_space<vmem>>, vector<16x8xf32>
    tpu.vector_store %arg6[%c0_49, %c0_50], %165 {strides = array<i32>} : memref<16x8xf32, #tpu.memory_space<vmem>>, vector<16x8xf32>,
    return
  }
}

</mosaic_0001>

<llo_original>
// kernel: self_attention_forward.1
$region0: #{self_attention_forward.1}
  #allocation0 [shape = 'u32[]', space=smem, size = 0x4, offset = 0x4, fixed_abs, tag = 'smem constant byte address 0x4 - core index']
  #allocation1 [shape = 'u32[72,128]{1,0:T(1,128)}', space=vmem, size = 0x9000, scoped, tag = 'internal scratch']
  %s0 = inlined_call_operand.vmem [shape: f32[16,32], index: 0, kind: input, shape index: {}]
  %s1 = inlined_call_operand.vmem [shape: f32[32,96], index: 1, kind: input, shape index: {}]
  %s2 = inlined_call_operand.vmem [shape: f32[1,96], index: 2, kind: input, shape index: {}]
  %s3 = inlined_call_operand.hbm [shape: f32[32,32], index: 3, kind: input, shape index: {}]
  %s4 = inlined_call_operand.vmem [shape: f32[1,32], index: 4, kind: input, shape index: {}]
  %s5 = inlined_call_operand.vmem [shape: f32[16,32], index: 5, kind: output, shape index: {0}]
  %s6 = inlined_call_operand.hbm [shape: f32[16,8], index: 6, kind: output, shape index: {1}]
  %7 = xla_tuple %s5, %s6
  %s8 = sld [smem:[#allocation0]]
  $region42: #{self_attention_forward.1} parent=0
    _
  %s10 = ssub.s32 1, %s8
  %s11 = scalar_select 0, %s10, %s8
  $region1: #{self_attention_forward.1} parent=0
    #allocation2 [shape = 'u8[16384]{0}', space=vmem, size = 0x4000, scoped, tag = 'input window, operand 3, single buffered']
    #allocation3 [shape = 's32[1]{0}', space=sflag, size = 0x4, scoped, tag = 'scoped memory for self_attention_forward.1']
    #allocation4 [shape = 's32[1]{0}', space=sflag, size = 0x4, scoped, tag = 'scoped memory for self_attention_forward.1']
    #allocation5 [shape = 'u8[8192]{0}', space=vmem, size = 0x2000, scoped, tag = 'output window, operand 1, single buffered']
    %12 = vsyncpa [#allocation3], 0
    %13 = vsyncpa [#allocation4], 0
    // Predicated region
    $region2: #{self_attention_forward.1} parent=1 // pred_check
      _
    $region3: #{self_attention_forward.1} parent=1 // pred_check_branch
      %15 = sbr.rel (0) target = $region5
    $region4: #{self_attention_forward.1} parent=1 // pred_region
      _
    $region5: #{self_attention_forward.1} parent=1 // pred_fallthru
      _
    // Predicated region
    $region6: #{self_attention_forward.1} parent=1 // pred_check
      _
    $region7: #{self_attention_forward.1} parent=1 // pred_check_branch
      %17 = sbr.rel (0) target = $region9
    $region8: #{self_attention_forward.1} parent=1 // pred_region
      _
    $region9: #{self_attention_forward.1} parent=1 // pred_fallthru
      _
    // Predicated region
    $region10: #{self_attention_forward.1} parent=1 // pred_check
      _
    $region11: #{self_attention_forward.1} parent=1 // pred_check_branch
      %19 = sbr.rel (0) target = $region13
    $region12: #{self_attention_forward.1} parent=1 // pred_region
      _
    $region13: #{self_attention_forward.1} parent=1 // pred_fallthru
      _
    // Predicated region
    $region14: #{self_attention_forward.1} parent=1 // pred_check
      _
    $region15: #{self_attention_forward.1} parent=1 // pred_check_branch
      %21 = sbr.rel (0) target = $region17
    $region16: #{self_attention_forward.1} parent=1 // pred_region
      %23 = vsyncadd [#allocation3], 0
      %s24 = sshll.u32 %s3, 4
      %s25 = int_to_ptr.hbm [resolvable:$true] %s24
      %s26 = sshll.u32 [#allocation2], 4
      %s27 = int_to_ptr.vmem [resolvable:$true] %s26
      %32 = dma.hbm_to_vmem [thread:$0]  %s25, 512, %s27, [#allocation3], 128, 128, 8
    $region17: #{self_attention_forward.1} parent=1 // pred_fallthru
      _
    // Predicated region
    $region18: #{self_attention_forward.1} parent=1 // pred_check
      _
    $region19: #{self_attention_forward.1} parent=1 // pred_check_branch
      %34 = sbr.rel (0) target = $region21
    $region20: #{self_attention_forward.1} parent=1 // pred_region
      _
    $region21: #{self_attention_forward.1} parent=1 // pred_fallthru
      _
    // Predicated region
    $region22: #{self_attention_forward.1} parent=1 // pred_check
      _
    $region23: #{self_attention_forward.1} parent=1 // pred_check_branch
      %36 = sbr.rel (0) target = $region25
    $region24: #{self_attention_forward.1} parent=1 // pred_region
      %38 = dma.done [#allocation3], 512
    $region25: #{self_attention_forward.1} parent=1 // pred_fallthru
      _
    %v39 = vld [vmem:[%s0] sm:$0xff]
    %v40 = vld [vmem:[%s0 + $0x8] sm:$0xff]
    %v41 = vld [vmem:[%s1] sm:$0xff]
    %v42 = vld [vmem:[%s1 + $0x8] sm:$0xff]
    %v43 = vld [vmem:[%s1 + $0x10] sm:$0xff]
    %v44 = vld [vmem:[%s1 + $0x18] sm:$0xff]
    %v45 = vld [vmem:[%s2] sm:$0x1]
    %v46 = vld [vmem:[#allocation2] sm:$0xff]
    %v47 = vld [vmem:[#allocation2 + $0x8] sm:$0xff]
    %v48 = vld [vmem:[#allocation2 + $0x10] sm:$0xff]
    %v49 = vld [vmem:[#allocation2 + $0x18] sm:$0xff]
    %v50 = vld [vmem:[%s4] sm:$0x1]
    %v52 = vperm.slane %v45, 0
    %vm54 = vcmask 261120
    %v56 = vsel %vm54, %v39, 0
    %v59 = vsel %vm54, %v40, 0
    %61 = vmatpush.msra.mxu0 0.0
    %62 = vmatpush.msra.mxu0 0.0
    %63 = vmatpush.msra.mxu0 0.0
    %64 = vmatpush.msra.mxu0 0.0
    %65 = vmatpush.msra.mxu0 0.0
    %66 = vmatpush.msra.mxu0 0.0
    %67 = vmatpush.msra.mxu0 0.0
    %68 = vmatpush.msra.mxu0 0.0
    %69 = vmatpush.msra.mxu0 0.0
    %70 = vmatpush.msra.mxu0 0.0
    %71 = vmatpush.msra.mxu0 0.0
    %72 = vmatpush.msra.mxu0 0.0
    %73 = vmatpush.msra.mxu0 %v44
    %74 = vmatpush.msra.mxu0 %v43
    %75 = vmatpush.msra.mxu0 %v42
    %76 = vmatpush.msra.mxu0 %v41
    %77 = vmatmul.f32.gmra.mxu0 %v56
    %v78 = vpop.f32.mrf.mxu0
    %v79 = vadd.f32 %v52, %v78
    %80 = vmatmul.f32.gmra.mxu0 %v59
    %v81 = vpop.f32.mrf.mxu0
    %v82 = vadd.f32 %v52, %v81
    %83 = vdwg.mxu0
    %85 = vrot.lane.b32.xlu0 %v79, 96
    %v86 = vpop.permute.xlu0 %85
    %vm87 = vcmask 64512
    %v88 = vsel %vm87, %v79, 0
    %v90 = vsel %vm87, %v86, 0
    %92 = vmatpush.xpose.msra.mxu0 0.0
    %93 = vmatpush.xpose.msra.mxu0 0.0
    %94 = vmatpush.xpose.msra.mxu0 0.0
    %95 = vmatpush.xpose.msra.mxu0 0.0
    %96 = vmatpush.xpose.msra.mxu0 0.0
    %97 = vmatpush.xpose.msra.mxu0 0.0
    %98 = vmatpush.xpose.msra.mxu0 0.0
    %99 = vmatpush.xpose.msra.mxu0 0.0
    %100 = vmatpush.xpose.msra.mxu0 0.0
    %101 = vmatpush.xpose.msra.mxu0 0.0
    %102 = vmatpush.xpose.msra.mxu0 0.0
    %103 = vmatpush.xpose.msra.mxu0 0.0
    %104 = vmatpush.xpose.msra.mxu0 0.0
    %105 = vmatpush.xpose.msra.mxu0 0.0
    %106 = vmatpush.xpose.msra.mxu0 0.0
    %107 = vmatpush.xpose.msra.mxu0 %v90
    %108 = vmatmul.f32.gmra.mxu0 %v88
    %v109 = vpop.f32.mrf.mxu0
    %v110 = vadd.f32 0.0, %v109
    %111 = vdwg.mxu0
    %v112 = vsel %vm87, %v110, -inf
    %113 = vmax.xlane.f32.xlu0 %v112
    %v114 = vpop.xlane.xlu0 %113
    %v115 = vsub.f32 %v110, %v114
    %v116 = vmul.f32 %v115, 1.442695
    %v117 = vpow.pop %v116
    %v118 = vsel %vm87, %v117, 0.0
    %119 = vadd.xlane.f32.xlu0 %v118
    %v120 = vpop.xlane.xlu0 %119
    %v121 = vrcp.pop %v120
    %v122 = vmul.f32 %v120, %v121
    %v123 = vsub.f32 1.0, %v122
    %v124 = vmul.f32 %v121, %v123
    %v125 = vadd.f32 %v121, %v124
    %vm126 = vweird.f32 %v120
    %vm127 = vweird.f32 %v121
    %vm128 = vmor %vm126, %vm127
    %v129 = vsel %vm128, %v121, %v125
    %v130 = vand.u32 2147483647, %v120
    %vm131 = vcmp.eq.f32.partialorder %v130, 8.507059e+37
    %v132 = vand.u32 %v120, 2147483648
    %v133 = vor.u32 1.1754944e-38, %v132
    %v134 = vsel %vm131, %v133, %v129
    %v135 = vmul.f32 %v117, %v134
    %v136 = vadd.f32 %v135, 0.0
    %137 = vrot.lane.b32.xlu0 %v79, 64
    %v138 = vpop.permute.xlu0 %137
    %v141 = vsel %vm87, %v135, 0
    %143 = vmatpush.msra.mxu0 0.0
    %144 = vmatpush.msra.mxu0 0.0
    %145 = vmatpush.msra.mxu0 0.0
    %146 = vmatpush.msra.mxu0 0.0
    %147 = vmatpush.msra.mxu0 0.0
    %148 = vmatpush.msra.mxu0 0.0
    %149 = vmatpush.msra.mxu0 0.0
    %150 = vmatpush.msra.mxu0 0.0
    %151 = vmatpush.msra.mxu0 0.0
    %152 = vmatpush.msra.mxu0 0.0
    %153 = vmatpush.msra.mxu0 0.0
    %154 = vmatpush.msra.mxu0 0.0
    %155 = vmatpush.msra.mxu0 0.0
    %156 = vmatpush.msra.mxu0 0.0
    %157 = vmatpush.msra.mxu0 0.0
    %158 = vmatpush.msra.mxu0 %v138
    %159 = vmatmul.f32.gmra.mxu0 %v141
    %v160 = vpop.f32.mrf.mxu0
    %v161 = vadd.f32 0.0, %v160
    %162 = vdwg.mxu0
    %163 = vrot.lane.b32.xlu0 %v79, 120
    %v164 = vpop.permute.xlu0 %163
    %165 = vrot.lane.b32.xlu0 %v79, 88
    %v166 = vpop.permute.xlu0 %165
    %v167 = vsel %vm87, %v164, 0
    %v169 = vsel %vm87, %v166, 0
    %171 = vmatpush.xpose.msra.mxu0 0.0
    %172 = vmatpush.xpose.msra.mxu0 0.0
    %173 = vmatpush.xpose.msra.mxu0 0.0
    %174 = vmatpush.xpose.msra.mxu0 0.0
    %175 = vmatpush.xpose.msra.mxu0 0.0
    %176 = vmatpush.xpose.msra.mxu0 0.0
    %177 = vmatpush.xpose.msra.mxu0 0.0
    %178 = vmatpush.xpose.msra.mxu0 0.0
    %179 = vmatpush.xpose.msra.mxu0 0.0
    %180 = vmatpush.xpose.msra.mxu0 0.0
    %181 = vmatpush.xpose.msra.mxu0 0.0
    %182 = vmatpush.xpose.msra.mxu0 0.0
    %183 = vmatpush.xpose.msra.mxu0 0.0
    %184 = vmatpush.xpose.msra.mxu0 0.0
    %185 = vmatpush.xpose.msra.mxu0 0.0
    %186 = vmatpush.xpose.msra.mxu0 %v169
    %187 = vmatmul.f32.gmra.mxu0 %v167
    %v188 = vpop.f32.mrf.mxu0
    %v189 = vadd.f32 0.0, %v188
    %190 = vdwg.mxu0
    %v191 = vsel %vm87, %v189, -inf
    %192 = vmax.xlane.f32.xlu0 %v191
    %v193 = vpop.xlane.xlu0 %192
    %v194 = vsub.f32 %v189, %v193
    %v195 = vmul.f32 %v194, 1.442695
    %v196 = vpow.pop %v195
    %v197 = vsel %vm87, %v196, 0.0
    %198 = vadd.xlane.f32.xlu0 %v197
    %v199 = vpop.xlane.xlu0 %198
    %v200 = vrcp.pop %v199
    %v201 = vmul.f32 %v199, %v200
    %v202 = vsub.f32 1.0, %v201
    %v203 = vmul.f32 %v200, %v202
    %v204 = vadd.f32 %v200, %v203
    %vm205 = vweird.f32 %v199
    %vm206 = vweird.f32 %v200
    %vm207 = vmor %vm205, %vm206
    %v208 = vsel %vm207, %v200, %v204
    %v209 = vand.u32 2147483647, %v199
    %vm210 = vcmp.eq.f32.partialorder %v209, 8.507059e+37
    %v211 = vand.u32 %v199, 2147483648
    %v212 = vor.u32 1.1754944e-38, %v211
    %v213 = vsel %vm210, %v212, %v208
    %v214 = vmul.f32 %v196, %v213
    %v215 = vadd.f32 %v136, %v214
    %216 = vrot.lane.b32.xlu0 %v79, 56
    %v217 = vpop.permute.xlu0 %216
    %v220 = vsel %vm87, %v214, 0
    %222 = vmatpush.msra.mxu0 0.0
    %223 = vmatpush.msra.mxu0 0.0
    %224 = vmatpush.msra.mxu0 0.0
    %225 = vmatpush.msra.mxu0 0.0
    %226 = vmatpush.msra.mxu0 0.0
    %227 = vmatpush.msra.mxu0 0.0
    %228 = vmatpush.msra.mxu0 0.0
    %229 = vmatpush.msra.mxu0 0.0
    %230 = vmatpush.msra.mxu0 0.0
    %231 = vmatpush.msra.mxu0 0.0
    %232 = vmatpush.msra.mxu0 0.0
    %233 = vmatpush.msra.mxu0 0.0
    %234 = vmatpush.msra.mxu0 0.0
    %235 = vmatpush.msra.mxu0 0.0
    %236 = vmatpush.msra.mxu0 0.0
    %237 = vmatpush.msra.mxu0 %v217
    %238 = vmatmul.f32.gmra.mxu0 %v220
    %v239 = vpop.f32.mrf.mxu0
    %v240 = vadd.f32 0.0, %v239
    %241 = vdwg.mxu0
    %242 = vrot.lane.b32.xlu0 %v79, 112
    %v243 = vpop.permute.xlu0 %242
    %244 = vrot.lane.b32.xlu0 %v79, 80
    %v245 = vpop.permute.xlu0 %244
    %v246 = vsel %vm87, %v243, 0
    %v248 = vsel %vm87, %v245, 0
    %250 = vmatpush.xpose.msra.mxu0 0.0
    %251 = vmatpush.xpose.msra.mxu0 0.0
    %252 = vmatpush.xpose.msra.mxu0 0.0
    %253 = vmatpush.xpose.msra.mxu0 0.0
    %254 = vmatpush.xpose.msra.mxu0 0.0
    %255 = vmatpush.xpose.msra.mxu0 0.0
    %256 = vmatpush.xpose.msra.mxu0 0.0
    %257 = vmatpush.xpose.msra.mxu0 0.0
    %258 = vmatpush.xpose.msra.mxu0 0.0
    %259 = vmatpush.xpose.msra.mxu0 0.0
    %260 = vmatpush.xpose.msra.mxu0 0.0
    %261 = vmatpush.xpose.msra.mxu0 0.0
    %262 = vmatpush.xpose.msra.mxu0 0.0
    %263 = vmatpush.xpose.msra.mxu0 0.0
    %264 = vmatpush.xpose.msra.mxu0 0.0
    %265 = vmatpush.xpose.msra.mxu0 %v248
    %266 = vmatmul.f32.gmra.mxu0 %v246
    %v267 = vpop.f32.mrf.mxu0
    %v268 = vadd.f32 0.0, %v267
    %269 = vdwg.mxu0
    %v270 = vsel %vm87, %v268, -inf
    %271 = vmax.xlane.f32.xlu0 %v270
    %v272 = vpop.xlane.xlu0 %271
    %v273 = vsub.f32 %v268, %v272
    %v274 = vmul.f32 %v273, 1.442695
    %v275 = vpow.pop %v274
    %v276 = vsel %vm87, %v275, 0.0
    %277 = vadd.xlane.f32.xlu0 %v276
    %v278 = vpop.xlane.xlu0 %277
    %v279 = vrcp.pop %v278
    %v280 = vmul.f32 %v278, %v279
    %v281 = vsub.f32 1.0, %v280
    %v282 = vmul.f32 %v279, %v281
    %v283 = vadd.f32 %v279, %v282
    %vm284 = vweird.f32 %v278
    %vm285 = vweird.f32 %v279
    %vm286 = vmor %vm284, %vm285
    %v287 = vsel %vm286, %v279, %v283
    %v288 = vand.u32 2147483647, %v278
    %vm289 = vcmp.eq.f32.partialorder %v288, 8.507059e+37
    %v290 = vand.u32 %v278, 2147483648
    %v291 = vor.u32 1.1754944e-38, %v290
    %v292 = vsel %vm289, %v291, %v287
    %v293 = vmul.f32 %v275, %v292
    %v294 = vadd.f32 %v215, %v293
    %295 = vrot.lane.b32.xlu0 %v79, 48
    %v296 = vpop.permute.xlu0 %295
    %v299 = vsel %vm87, %v293, 0
    %301 = vmatpush.msra.mxu0 0.0
    %302 = vmatpush.msra.mxu0 0.0
    %303 = vmatpush.msra.mxu0 0.0
    %304 = vmatpush.msra.mxu0 0.0
    %305 = vmatpush.msra.mxu0 0.0
    %306 = vmatpush.msra.mxu0 0.0
    %307 = vmatpush.msra.mxu0 0.0
    %308 = vmatpush.msra.mxu0 0.0
    %309 = vmatpush.msra.mxu0 0.0
    %310 = vmatpush.msra.mxu0 0.0
    %311 = vmatpush.msra.mxu0 0.0
    %312 = vmatpush.msra.mxu0 0.0
    %313 = vmatpush.msra.mxu0 0.0
    %314 = vmatpush.msra.mxu0 0.0
    %315 = vmatpush.msra.mxu0 0.0
    %316 = vmatpush.msra.mxu0 %v296
    %317 = vmatmul.f32.gmra.mxu0 %v299
    %v318 = vpop.f32.mrf.mxu0
    %v319 = vadd.f32 0.0, %v318
    %320 = vdwg.mxu0
    %321 = vrot.lane.b32.xlu0 %v79, 104
    %v322 = vpop.permute.xlu0 %321
    %323 = vrot.lane.b32.xlu0 %v79, 72
    %v324 = vpop.permute.xlu0 %323
    %v325 = vsel %vm87, %v322, 0
    %v327 = vsel %vm87, %v324, 0
    %329 = vmatpush.xpose.msra.mxu0 0.0
    %330 = vmatpush.xpose.msra.mxu0 0.0
    %331 = vmatpush.xpose.msra.mxu0 0.0
    %332 = vmatpush.xpose.msra.mxu0 0.0
    %333 = vmatpush.xpose.msra.mxu0 0.0
    %334 = vmatpush.xpose.msra.mxu0 0.0
    %335 = vmatpush.xpose.msra.mxu0 0.0
    %336 = vmatpush.xpose.msra.mxu0 0.0
    %337 = vmatpush.xpose.msra.mxu0 0.0
    %338 = vmatpush.xpose.msra.mxu0 0.0
    %339 = vmatpush.xpose.msra.mxu0 0.0
    %340 = vmatpush.xpose.msra.mxu0 0.0
    %341 = vmatpush.xpose.msra.mxu0 0.0
    %342 = vmatpush.xpose.msra.mxu0 0.0
    %343 = vmatpush.xpose.msra.mxu0 0.0
    %344 = vmatpush.xpose.msra.mxu0 %v327
    %345 = vmatmul.f32.gmra.mxu0 %v325
    %v346 = vpop.f32.mrf.mxu0
    %v347 = vadd.f32 0.0, %v346
    %348 = vdwg.mxu0
    %v349 = vsel %vm87, %v347, -inf
    %350 = vmax.xlane.f32.xlu0 %v349
    %v351 = vpop.xlane.xlu0 %350
    %v352 = vsub.f32 %v347, %v351
    %v353 = vmul.f32 %v352, 1.442695
    %v354 = vpow.pop %v353
    %v355 = vsel %vm87, %v354, 0.0
    %356 = vadd.xlane.f32.xlu0 %v355
    %v357 = vpop.xlane.xlu0 %356
    %v358 = vrcp.pop %v357
    %v359 = vmul.f32 %v357, %v358
    %v360 = vsub.f32 1.0, %v359
    %v361 = vmul.f32 %v358, %v360
    %v362 = vadd.f32 %v358, %v361
    %vm363 = vweird.f32 %v357
    %vm364 = vweird.f32 %v358
    %vm365 = vmor %vm363, %vm364
    %v366 = vsel %vm365, %v358, %v362
    %v367 = vand.u32 2147483647, %v357
    %vm368 = vcmp.eq.f32.partialorder %v367, 8.507059e+37
    %v369 = vand.u32 %v357, 2147483648
    %v370 = vor.u32 1.1754944e-38, %v369
    %v371 = vsel %vm368, %v370, %v366
    %v372 = vmul.f32 %v354, %v371
    %v373 = vadd.f32 %v294, %v372
    %374 = vrot.lane.b32.xlu0 %v79, 40
    %v375 = vpop.permute.xlu0 %374
    %v378 = vsel %vm87, %v372, 0
    %380 = vmatpush.msra.mxu0 0.0
    %381 = vmatpush.msra.mxu0 0.0
    %382 = vmatpush.msra.mxu0 0.0
    %383 = vmatpush.msra.mxu0 0.0
    %384 = vmatpush.msra.mxu0 0.0
    %385 = vmatpush.msra.mxu0 0.0
    %386 = vmatpush.msra.mxu0 0.0
    %387 = vmatpush.msra.mxu0 0.0
    %388 = vmatpush.msra.mxu0 0.0
    %389 = vmatpush.msra.mxu0 0.0
    %390 = vmatpush.msra.mxu0 0.0
    %391 = vmatpush.msra.mxu0 0.0
    %392 = vmatpush.msra.mxu0 0.0
    %393 = vmatpush.msra.mxu0 0.0
    %394 = vmatpush.msra.mxu0 0.0
    %395 = vmatpush.msra.mxu0 %v375
    %396 = vmatmul.f32.gmra.mxu0 %v378
    %v397 = vpop.f32.mrf.mxu0
    %v398 = vadd.f32 0.0, %v397
    %399 = vdwg.mxu0
    %401 = vrot.lane.b32.xlu0 %v240, 8
    %v402 = vpop.permute.xlu0 %401
    %405 = vrot.lane.b32.xlu0 %v319, 16
    %v406 = vpop.permute.xlu0 %405
    %409 = vrot.lane.b32.xlu0 %v398, 24
    %v410 = vpop.permute.xlu0 %409
    %v412 = vsel %vm87, %v161, %v402
    %vm413 = vcmask 130048
    %v414 = vsel %vm413, %v412, %v406
    %vm415 = vcmask 195584
    %v416 = vsel %vm415, %v414, %v410
    %v417 = vmul.f32 %v373, 0.25
    %419 = vrot.lane.b32.xlu0 %v82, 96
    %v420 = vpop.permute.xlu0 %419
    %v421 = vsel %vm87, %v82, 0
    %v423 = vsel %vm87, %v420, 0
    %425 = vmatpush.xpose.msra.mxu0 0.0
    %426 = vmatpush.xpose.msra.mxu0 0.0
    %427 = vmatpush.xpose.msra.mxu0 0.0
    %428 = vmatpush.xpose.msra.mxu0 0.0
    %429 = vmatpush.xpose.msra.mxu0 0.0
    %430 = vmatpush.xpose.msra.mxu0 0.0
    %431 = vmatpush.xpose.msra.mxu0 0.0
    %432 = vmatpush.xpose.msra.mxu0 0.0
    %433 = vmatpush.xpose.msra.mxu0 0.0
    %434 = vmatpush.xpose.msra.mxu0 0.0
    %435 = vmatpush.xpose.msra.mxu0 0.0
    %436 = vmatpush.xpose.msra.mxu0 0.0
    %437 = vmatpush.xpose.msra.mxu0 0.0
    %438 = vmatpush.xpose.msra.mxu0 0.0
    %439 = vmatpush.xpose.msra.mxu0 0.0
    %440 = vmatpush.xpose.msra.mxu0 %v423
    %441 = vmatmul.f32.gmra.mxu0 %v421
    %v442 = vpop.f32.mrf.mxu0
    %v443 = vadd.f32 0.0, %v442
    %444 = vdwg.mxu0
    %v445 = vsel %vm87, %v443, -inf
    %446 = vmax.xlane.f32.xlu0 %v445
    %v447 = vpop.xlane.xlu0 %446
    %v448 = vsub.f32 %v443, %v447
    %v449 = vmul.f32 %v448, 1.442695
    %v450 = vpow.pop %v449
    %v451 = vsel %vm87, %v450, 0.0
    %452 = vadd.xlane.f32.xlu0 %v451
    %v453 = vpop.xlane.xlu0 %452
    %v454 = vrcp.pop %v453
    %v455 = vmul.f32 %v453, %v454
    %v456 = vsub.f32 1.0, %v455
    %v457 = vmul.f32 %v454, %v456
    %v458 = vadd.f32 %v454, %v457
    %vm459 = vweird.f32 %v453
    %vm460 = vweird.f32 %v454
    %vm461 = vmor %vm459, %vm460
    %v462 = vsel %vm461, %v454, %v458
    %v463 = vand.u32 2147483647, %v453
    %vm464 = vcmp.eq.f32.partialorder %v463, 8.507059e+37
    %v465 = vand.u32 %v453, 2147483648
    %v466 = vor.u32 1.1754944e-38, %v465
    %v467 = vsel %vm464, %v466, %v462
    %v468 = vmul.f32 %v450, %v467
    %v469 = vadd.f32 %v468, 0.0
    %470 = vrot.lane.b32.xlu0 %v82, 64
    %v471 = vpop.permute.xlu0 %470
    %v474 = vsel %vm87, %v468, 0
    %476 = vmatpush.msra.mxu0 0.0
    %477 = vmatpush.msra.mxu0 0.0
    %478 = vmatpush.msra.mxu0 0.0
    %479 = vmatpush.msra.mxu0 0.0
    %480 = vmatpush.msra.mxu0 0.0
    %481 = vmatpush.msra.mxu0 0.0
    %482 = vmatpush.msra.mxu0 0.0
    %483 = vmatpush.msra.mxu0 0.0
    %484 = vmatpush.msra.mxu0 0.0
    %485 = vmatpush.msra.mxu0 0.0
    %486 = vmatpush.msra.mxu0 0.0
    %487 = vmatpush.msra.mxu0 0.0
    %488 = vmatpush.msra.mxu0 0.0
    %489 = vmatpush.msra.mxu0 0.0
    %490 = vmatpush.msra.mxu0 0.0
    %491 = vmatpush.msra.mxu0 %v471
    %492 = vmatmul.f32.gmra.mxu0 %v474
    %v493 = vpop.f32.mrf.mxu0
    %v494 = vadd.f32 0.0, %v493
    %495 = vdwg.mxu0
    %496 = vrot.lane.b32.xlu0 %v82, 120
    %v497 = vpop.permute.xlu0 %496
    %498 = vrot.lane.b32.xlu0 %v82, 88
    %v499 = vpop.permute.xlu0 %498
    %v500 = vsel %vm87, %v497, 0
    %v502 = vsel %vm87, %v499, 0
    %504 = vmatpush.xpose.msra.mxu0 0.0
    %505 = vmatpush.xpose.msra.mxu0 0.0
    %506 = vmatpush.xpose.msra.mxu0 0.0
    %507 = vmatpush.xpose.msra.mxu0 0.0
    %508 = vmatpush.xpose.msra.mxu0 0.0
    %509 = vmatpush.xpose.msra.mxu0 0.0
    %510 = vmatpush.xpose.msra.mxu0 0.0
    %511 = vmatpush.xpose.msra.mxu0 0.0
    %512 = vmatpush.xpose.msra.mxu0 0.0
    %513 = vmatpush.xpose.msra.mxu0 0.0
    %514 = vmatpush.xpose.msra.mxu0 0.0
    %515 = vmatpush.xpose.msra.mxu0 0.0
    %516 = vmatpush.xpose.msra.mxu0 0.0
    %517 = vmatpush.xpose.msra.mxu0 0.0
    %518 = vmatpush.xpose.msra.mxu0 0.0
    %519 = vmatpush.xpose.msra.mxu0 %v502
    %520 = vmatmul.f32.gmra.mxu0 %v500
    %v521 = vpop.f32.mrf.mxu0
    %v522 = vadd.f32 0.0, %v521
    %523 = vdwg.mxu0
    %v524 = vsel %vm87, %v522, -inf
    %525 = vmax.xlane.f32.xlu0 %v524
    %v526 = vpop.xlane.xlu0 %525
    %v527 = vsub.f32 %v522, %v526
    %v528 = vmul.f32 %v527, 1.442695
    %v529 = vpow.pop %v528
    %v530 = vsel %vm87, %v529, 0.0
    %531 = vadd.xlane.f32.xlu0 %v530
    %v532 = vpop.xlane.xlu0 %531
    %v533 = vrcp.pop %v532
    %v534 = vmul.f32 %v532, %v533
    %v535 = vsub.f32 1.0, %v534
    %v536 = vmul.f32 %v533, %v535
    %v537 = vadd.f32 %v533, %v536
    %vm538 = vweird.f32 %v532
    %vm539 = vweird.f32 %v533
    %vm540 = vmor %vm538, %vm539
    %v541 = vsel %vm540, %v533, %v537
    %v542 = vand.u32 2147483647, %v532
    %vm543 = vcmp.eq.f32.partialorder %v542, 8.507059e+37
    %v544 = vand.u32 %v532, 2147483648
    %v545 = vor.u32 1.1754944e-38, %v544
    %v546 = vsel %vm543, %v545, %v541
    %v547 = vmul.f32 %v529, %v546
    %v548 = vadd.f32 %v469, %v547
    %549 = vrot.lane.b32.xlu0 %v82, 56
    %v550 = vpop.permute.xlu0 %549
    %v553 = vsel %vm87, %v547, 0
    %555 = vmatpush.msra.mxu0 0.0
    %556 = vmatpush.msra.mxu0 0.0
    %557 = vmatpush.msra.mxu0 0.0
    %558 = vmatpush.msra.mxu0 0.0
    %559 = vmatpush.msra.mxu0 0.0
    %560 = vmatpush.msra.mxu0 0.0
    %561 = vmatpush.msra.mxu0 0.0
    %562 = vmatpush.msra.mxu0 0.0
    %563 = vmatpush.msra.mxu0 0.0
    %564 = vmatpush.msra.mxu0 0.0
    %565 = vmatpush.msra.mxu0 0.0
    %566 = vmatpush.msra.mxu0 0.0
    %567 = vmatpush.msra.mxu0 0.0
    %568 = vmatpush.msra.mxu0 0.0
    %569 = vmatpush.msra.mxu0 0.0
    %570 = vmatpush.msra.mxu0 %v550
    %571 = vmatmul.f32.gmra.mxu0 %v553
    %v572 = vpop.f32.mrf.mxu0
    %v573 = vadd.f32 0.0, %v572
    %574 = vdwg.mxu0
    %575 = vrot.lane.b32.xlu0 %v82, 112
    %v576 = vpop.permute.xlu0 %575
    %577 = vrot.lane.b32.xlu0 %v82, 80
    %v578 = vpop.permute.xlu0 %577
    %v579 = vsel %vm87, %v576, 0
    %v581 = vsel %vm87, %v578, 0
    %583 = vmatpush.xpose.msra.mxu0 0.0
    %584 = vmatpush.xpose.msra.mxu0 0.0
    %585 = vmatpush.xpose.msra.mxu0 0.0
    %586 = vmatpush.xpose.msra.mxu0 0.0
    %587 = vmatpush.xpose.msra.mxu0 0.0
    %588 = vmatpush.xpose.msra.mxu0 0.0
    %589 = vmatpush.xpose.msra.mxu0 0.0
    %590 = vmatpush.xpose.msra.mxu0 0.0
    %591 = vmatpush.xpose.msra.mxu0 0.0
    %592 = vmatpush.xpose.msra.mxu0 0.0
    %593 = vmatpush.xpose.msra.mxu0 0.0
    %594 = vmatpush.xpose.msra.mxu0 0.0
    %595 = vmatpush.xpose.msra.mxu0 0.0
    %596 = vmatpush.xpose.msra.mxu0 0.0
    %597 = vmatpush.xpose.msra.mxu0 0.0
    %598 = vmatpush.xpose.msra.mxu0 %v581
    %599 = vmatmul.f32.gmra.mxu0 %v579
    %v600 = vpop.f32.mrf.mxu0
    %v601 = vadd.f32 0.0, %v600
    %602 = vdwg.mxu0
    %v603 = vsel %vm87, %v601, -inf
    %604 = vmax.xlane.f32.xlu0 %v603
    %v605 = vpop.xlane.xlu0 %604
    %v606 = vsub.f32 %v601, %v605
    %v607 = vmul.f32 %v606, 1.442695
    %v608 = vpow.pop %v607
    %v609 = vsel %vm87, %v608, 0.0
    %610 = vadd.xlane.f32.xlu0 %v609
    %v611 = vpop.xlane.xlu0 %610
    %v612 = vrcp.pop %v611
    %v613 = vmul.f32 %v611, %v612
    %v614 = vsub.f32 1.0, %v613
    %v615 = vmul.f32 %v612, %v614
    %v616 = vadd.f32 %v612, %v615
    %vm617 = vweird.f32 %v611
    %vm618 = vweird.f32 %v612
    %vm619 = vmor %vm617, %vm618
    %v620 = vsel %vm619, %v612, %v616
    %v621 = vand.u32 2147483647, %v611
    %vm622 = vcmp.eq.f32.partialorder %v621, 8.507059e+37
    %v623 = vand.u32 %v611, 2147483648
    %v624 = vor.u32 1.1754944e-38, %v623
    %v625 = vsel %vm622, %v624, %v620
    %v626 = vmul.f32 %v608, %v625
    %v627 = vadd.f32 %v548, %v626
    %628 = vrot.lane.b32.xlu0 %v82, 48
    %v629 = vpop.permute.xlu0 %628
    %v632 = vsel %vm87, %v626, 0
    %634 = vmatpush.msra.mxu0 0.0
    %635 = vmatpush.msra.mxu0 0.0
    %636 = vmatpush.msra.mxu0 0.0
    %637 = vmatpush.msra.mxu0 0.0
    %638 = vmatpush.msra.mxu0 0.0
    %639 = vmatpush.msra.mxu0 0.0
    %640 = vmatpush.msra.mxu0 0.0
    %641 = vmatpush.msra.mxu0 0.0
    %642 = vmatpush.msra.mxu0 0.0
    %643 = vmatpush.msra.mxu0 0.0
    %644 = vmatpush.msra.mxu0 0.0
    %645 = vmatpush.msra.mxu0 0.0
    %646 = vmatpush.msra.mxu0 0.0
    %647 = vmatpush.msra.mxu0 0.0
    %648 = vmatpush.msra.mxu0 0.0
    %649 = vmatpush.msra.mxu0 %v629
    %650 = vmatmul.f32.gmra.mxu0 %v632
    %v651 = vpop.f32.mrf.mxu0
    %v652 = vadd.f32 0.0, %v651
    %653 = vdwg.mxu0
    %654 = vrot.lane.b32.xlu0 %v82, 104
    %v655 = vpop.permute.xlu0 %654
    %656 = vrot.lane.b32.xlu0 %v82, 72
    %v657 = vpop.permute.xlu0 %656
    %v658 = vsel %vm87, %v655, 0
    %v660 = vsel %vm87, %v657, 0
    %662 = vmatpush.xpose.msra.mxu0 0.0
    %663 = vmatpush.xpose.msra.mxu0 0.0
    %664 = vmatpush.xpose.msra.mxu0 0.0
    %665 = vmatpush.xpose.msra.mxu0 0.0
    %666 = vmatpush.xpose.msra.mxu0 0.0
    %667 = vmatpush.xpose.msra.mxu0 0.0
    %668 = vmatpush.xpose.msra.mxu0 0.0
    %669 = vmatpush.xpose.msra.mxu0 0.0
    %670 = vmatpush.xpose.msra.mxu0 0.0
    %671 = vmatpush.xpose.msra.mxu0 0.0
    %672 = vmatpush.xpose.msra.mxu0 0.0
    %673 = vmatpush.xpose.msra.mxu0 0.0
    %674 = vmatpush.xpose.msra.mxu0 0.0
    %675 = vmatpush.xpose.msra.mxu0 0.0
    %676 = vmatpush.xpose.msra.mxu0 0.0
    %677 = vmatpush.xpose.msra.mxu0 %v660
    %678 = vmatmul.f32.gmra.mxu0 %v658
    %v679 = vpop.f32.mrf.mxu0
    %v680 = vadd.f32 0.0, %v679
    %681 = vdwg.mxu0
    %v682 = vsel %vm87, %v680, -inf
    %683 = vmax.xlane.f32.xlu0 %v682
    %v684 = vpop.xlane.xlu0 %683
    %v685 = vsub.f32 %v680, %v684
    %v686 = vmul.f32 %v685, 1.442695
    %v687 = vpow.pop %v686
    %v688 = vsel %vm87, %v687, 0.0
    %689 = vadd.xlane.f32.xlu0 %v688
    %v690 = vpop.xlane.xlu0 %689
    %v691 = vrcp.pop %v690
    %v692 = vmul.f32 %v690, %v691
    %v693 = vsub.f32 1.0, %v692
    %v694 = vmul.f32 %v691, %v693
    %v695 = vadd.f32 %v691, %v694
    %vm696 = vweird.f32 %v690
    %vm697 = vweird.f32 %v691
    %vm698 = vmor %vm696, %vm697
    %v699 = vsel %vm698, %v691, %v695
    %v700 = vand.u32 2147483647, %v690
    %vm701 = vcmp.eq.f32.partialorder %v700, 8.507059e+37
    %v702 = vand.u32 %v690, 2147483648
    %v703 = vor.u32 1.1754944e-38, %v702
    %v704 = vsel %vm701, %v703, %v699
    %v705 = vmul.f32 %v687, %v704
    %v706 = vadd.f32 %v627, %v705
    %707 = vrot.lane.b32.xlu0 %v82, 40
    %v708 = vpop.permute.xlu0 %707
    %v711 = vsel %vm87, %v705, 0
    %713 = vmatpush.msra.mxu0 0.0
    %714 = vmatpush.msra.mxu0 0.0
    %715 = vmatpush.msra.mxu0 0.0
    %716 = vmatpush.msra.mxu0 0.0
    %717 = vmatpush.msra.mxu0 0.0
    %718 = vmatpush.msra.mxu0 0.0
    %719 = vmatpush.msra.mxu0 0.0
    %720 = vmatpush.msra.mxu0 0.0
    %721 = vmatpush.msra.mxu0 0.0
    %722 = vmatpush.msra.mxu0 0.0
    %723 = vmatpush.msra.mxu0 0.0
    %724 = vmatpush.msra.mxu0 0.0
    %725 = vmatpush.msra.mxu0 0.0
    %726 = vmatpush.msra.mxu0 0.0
    %727 = vmatpush.msra.mxu0 0.0
    %728 = vmatpush.msra.mxu0 %v708
    %729 = vmatmul.f32.gmra.mxu0 %v711
    %v730 = vpop.f32.mrf.mxu0
    %v731 = vadd.f32 0.0, %v730
    %732 = vdwg.mxu0
    %734 = vrot.lane.b32.xlu0 %v573, 8
    %v735 = vpop.permute.xlu0 %734
    %738 = vrot.lane.b32.xlu0 %v652, 16
    %v739 = vpop.permute.xlu0 %738
    %742 = vrot.lane.b32.xlu0 %v731, 24
    %v743 = vpop.permute.xlu0 %742
    %v745 = vsel %vm87, %v494, %v735
    %v746 = vsel %vm413, %v745, %v739
    %v747 = vsel %vm415, %v746, %v743
    %v748 = vmul.f32 %v706, 0.25
    %v750 = vperm.slane %v50, 0
    %v753 = vsel %vm54, %v416, 0
    %v756 = vsel %vm54, %v747, 0
    %758 = vmatpush.msra.mxu0 0.0
    %759 = vmatpush.msra.mxu0 0.0
    %760 = vmatpush.msra.mxu0 0.0
    %761 = vmatpush.msra.mxu0 0.0
    %762 = vmatpush.msra.mxu0 0.0
    %763 = vmatpush.msra.mxu0 0.0
    %764 = vmatpush.msra.mxu0 0.0
    %765 = vmatpush.msra.mxu0 0.0
    %766 = vmatpush.msra.mxu0 0.0
    %767 = vmatpush.msra.mxu0 0.0
    %768 = vmatpush.msra.mxu0 0.0
    %769 = vmatpush.msra.mxu0 0.0
    %770 = vmatpush.msra.mxu0 %v49
    %771 = vmatpush.msra.mxu0 %v48
    %772 = vmatpush.msra.mxu0 %v47
    %773 = vmatpush.msra.mxu0 %v46
    %774 = vmatmul.f32.gmra.mxu0 %v753
    %v775 = vpop.f32.mrf.mxu0
    %v776 = vadd.f32 %v750, %v775
    %777 = vmatmul.f32.gmra.mxu0 %v756
    %v778 = vpop.f32.mrf.mxu0
    %v779 = vadd.f32 %v750, %v778
    %780 = vdwg.mxu0
    %v781 = vmax.f32 %v776, 0.0
    %v782 = vmax.f32 %v779, 0.0
    %783 = vst.msk [vmem:[%s5] sm:$0xff] %vm54, %v781
    %784 = vst.msk [vmem:[%s5 + $0x8] sm:$0xff] %vm54, %v782
    %785 = vst.msk [vmem:[#allocation5] sm:$0xff] %vm87, %v417
    %786 = vst.msk [vmem:[#allocation5 + $0x8] sm:$0xff] %vm87, %v748
    // Predicated region
    $region26: #{self_attention_forward.1} parent=1 // pred_check
      _
    $region27: #{self_attention_forward.1} parent=1 // pred_check_branch
      %788 = sbr.rel (0) target = $region29
    $region28: #{self_attention_forward.1} parent=1 // pred_region
      _
    $region29: #{self_attention_forward.1} parent=1 // pred_fallthru
      _
    // Predicated region
    $region30: #{self_attention_forward.1} parent=1 // pred_check
      _
    $region31: #{self_attention_forward.1} parent=1 // pred_check_branch
      %790 = sbr.rel (0) target = $region33
    $region32: #{self_attention_forward.1} parent=1 // pred_region
      %792 = vsyncadd [#allocation4], 0
      %s793 = sshll.u32 [#allocation5], 4
      %s794 = int_to_ptr.vmem [resolvable:$true] %s793
      %s795 = sshll.u32 %s6, 4
      %s796 = int_to_ptr.hbm [resolvable:$true] %s795
      %801 = dma.vmem_to_hbm [thread:$0]  %s794, 256, %s796, [#allocation4], 128, 128, 8
    $region33: #{self_attention_forward.1} parent=1 // pred_fallthru
      _
    // Predicated region
    $region34: #{self_attention_forward.1} parent=1 // pred_check
      _
    $region35: #{self_attention_forward.1} parent=1 // pred_check_branch
      %803 = sbr.rel (0) target = $region37
    $region36: #{self_attention_forward.1} parent=1 // pred_region
      _
    $region37: #{self_attention_forward.1} parent=1 // pred_fallthru
      _
    // Predicated region
    $region38: #{self_attention_forward.1} parent=1 // pred_check
      _
    $region39: #{self_attention_forward.1} parent=1 // pred_check_branch
      %805 = sbr.rel (0) target = $region41
    $region40: #{self_attention_forward.1} parent=1 // pred_region
      %807 = dma.done [#allocation4], 256
    $region41: #{self_attention_forward.1} parent=1 // pred_fallthru
      _
    %808 = vsyncpa [#allocation3], 1
    %809 = vsyncpa [#allocation4], 1

</llo_original>
